<compile_context>
chip_gen: v5e
topology: v5e:2x2
jax: 0.10.0
libtpu: 0.0.40
codegen_flags: <defaults>
</compile_context>

<pallas_src>
import functools

import jax
import jax.numpy as jnp
from jax.experimental import pallas as pl
from jax.experimental.pallas import tpu as pltpu


# ----------------------------------------------------------------------------
# Kernel
# ----------------------------------------------------------------------------
def _ls_loss_kernel(logits_ref, tgt_logit_ref, out_ref,
                    m_sc, l_sc, sumx_sc,
                    *, eta: float, num_class: int, tile_c: int):
    """Grid point (i, k): batch tile i, class tile k.

    Scratch (lives across the class axis, re-initialised at k == 0):
      m_sc    (TILE_B, 1)  running row max
      l_sc    (TILE_B, 1)  running sum(exp(x - m))
      sumx_sc (TILE_B, 1)  running sum_c x
    """
    k = pl.program_id(1)
    nc = pl.num_programs(1)

    @pl.when(k == 0)
    def _init():
        m_sc[...] = jnp.full(m_sc.shape, -jnp.inf, jnp.float32)
        l_sc[...] = jnp.zeros(l_sc.shape, jnp.float32)
        sumx_sc[...] = jnp.zeros(sumx_sc.shape, jnp.float32)

    x = logits_ref[...].astype(jnp.float32)          # (TILE_B, TILE_C) f32
    tb, tc = x.shape

    def accumulate(x_val, x_sum):
        # x_val: masked lanes -> -inf (for max / exp); x_sum: masked -> 0.
        m_prev = m_sc[...]
        m_new = jnp.maximum(m_prev, jnp.max(x_val, axis=1, keepdims=True))
        alpha = jnp.exp(m_prev - m_new)
        p = jnp.exp(x_val - m_new)                   # exp(-inf) == 0 on masked
        l_sc[...] = alpha * l_sc[...] + jnp.sum(p, axis=1, keepdims=True)
        m_sc[...] = m_new
        sumx_sc[...] += jnp.sum(x_sum, axis=1, keepdims=True)

    # Only the last class tile can be partial; gate the masked path at trace
    # time and at runtime so full tiles pay zero masking cost.
    tail = num_class % tile_c
    if tail != 0:
        @pl.when(k < nc - 1)
        def _full_tile():
            accumulate(x, x)

        @pl.when(k == nc - 1)
        def _tail_tile():
            col = jax.lax.broadcasted_iota(jnp.int32, (tb, tc), 1)
            valid = col < tail
            accumulate(jnp.where(valid, x, -jnp.inf),
                       jnp.where(valid, x, 0.0))
    else:
        accumulate(x, x)

    # ---- finalize: per-row smoothed cross-entropy ---------------------------
    @pl.when(k == nc - 1)
    def _finalize():
        lse = m_sc[...] + jnp.log(l_sc[...])                     # (TILE_B, 1)
        sum_log_sm = sumx_sc[...] - jnp.float32(num_class) * lse
        tgt_log_sm = tgt_logit_ref[...] - lse
        off_w = jnp.float32(eta / (num_class - 1))
        tgt_w = jnp.float32(1.0 - eta) - off_w
        out_ref[...] = -(off_w * sum_log_sm + tgt_w * tgt_log_sm)


# ----------------------------------------------------------------------------
# Tiling policy
# ----------------------------------------------------------------------------
def _round_up(x: int, m: int) -> int:
    return ((x + m - 1) // m) * m


def _vmem_capacity_bytes() -> int:
    try:
        return int(pltpu.get_tpu_info().vmem_capacity_bytes)
    except Exception:
        return 64 * 1024 * 1024  # conservative (v7x per-TC VMEM)


def _choose_tiles(B: int, C: int, itemsize: int, block_budget_bytes: int):
    # Class (lane-contiguous) axis: grow first; tail handled by masked path.
    max_tc = 8192
    tile_c = C if C <= max_tc else max_tc
    # Batch (sublane) axis: fill the per-block budget, multiple of 8.
    rows = block_budget_bytes // max(1, tile_c * itemsize)
    tile_b = max(8, min(512, (rows // 8) * 8))
    if tile_b >= B:
        tile_b = B
    # Prefer >= 2 batch tiles so the "parallel" batch axis can feed both v7x
    # TensorCores; only a couple of extra grid steps on single-TC chips.
    if tile_b == B and B > 8:
        tile_b = _round_up(-(-B // 2), 8)
        if tile_b >= B:
            tile_b = B
    return tile_b, tile_c


def _check_tile(t: int, full: int, align: int, name: str):
    if t != full and (t <= 0 or t % align != 0):
        raise ValueError(
            f"{name}={t} must be a positive multiple of {align} or equal the "
            f"full dimension ({full})")


# ----------------------------------------------------------------------------
# Public entry point
# ----------------------------------------------------------------------------
def ls_criterion(logits: jax.Array, target: jax.Array, eta: float,
                 *, tile_b=None, tile_c=None) -> jax.Array:
    """Label-smoothing cross-entropy matching LSCritierion.forward."""
    assert eta > 0, "eta should be larger than 0"
    B, C = logits.shape
    assert C > 1, "label smoothing needs num_class > 1 (eta / (C - 1))"

    itemsize = jnp.dtype(logits.dtype).itemsize
    cap = _vmem_capacity_bytes()
    block_budget = max(2 << 20, min(16 << 20, cap // 8))
    vmem_limit = min((cap * 3) // 4, 96 << 20)

    d_tb, d_tc = _choose_tiles(B, C, itemsize, block_budget)
    tile_b = d_tb if tile_b is None else int(tile_b)
    tile_c = d_tc if tile_c is None else int(tile_c)
    _check_tile(tile_b, B, 8, "tile_b")
    _check_tile(tile_c, C, 128, "tile_c")

    nb = pl.cdiv(B, tile_b)
    nc = pl.cdiv(C, tile_c)

    # Hoist the target-logit gather out of the kernel hot loop: gather in the
    # original dtype (keeps bf16 logits un-promoted in HBM), cast the tiny
    # (B, 1) result to f32.
    tgt_logit = jnp.take_along_axis(
        logits, target.astype(jnp.int32)[:, None], axis=1).astype(jnp.float32)

    kernel = functools.partial(_ls_loss_kernel, eta=float(eta),
                               num_class=C, tile_c=tile_c)

    row_loss = pl.pallas_call(
        kernel,
        out_shape=jax.ShapeDtypeStruct((B, 1), jnp.float32),
        grid_spec=pltpu.PrefetchScalarGridSpec(
            num_scalar_prefetch=0,
            grid=(nb, nc),
            in_specs=[
                pl.BlockSpec((tile_b, tile_c), lambda i, k: (i, k)),
                pl.BlockSpec((tile_b, 1), lambda i, k: (i, 0)),
            ],
            out_specs=pl.BlockSpec((tile_b, 1), lambda i, k: (i, 0)),
            scratch_shapes=[pltpu.VMEM((tile_b, 1), jnp.float32)
                            for _ in range(3)],
        ),
        compiler_params=pltpu.CompilerParams(
            dimension_semantics=("parallel", "arbitrary"),
            vmem_limit_bytes=int(vmem_limit),
        ),
    )(logits, tgt_logit)

    # Tiny (B, 1) reduction + mean is left to XLA.
    return jnp.sum(row_loss) / jnp.float32(B)


# ----------------------------------------------------------------------------
# Pure-JAX reference + self-test
# ----------------------------------------------------------------------------
def _ls_criterion_ref(logits, target, eta):
    """Pure-JAX reference (mirrors the PyTorch module)."""
    B, C = logits.shape
    one_hot = jnp.full((B, C), eta / (C - 1), dtype=jnp.float32)
    one_hot = one_hot.at[jnp.arange(B), target].set(1.0 - eta)
    log_sm = jax.nn.log_softmax(logits.astype(jnp.float32), axis=1)
    return -jnp.sum(log_sm * one_hot) / B


if __name__ == "__main__":
    key = jax.random.PRNGKey(0)
    eta = 0.1
    k1, k2, k3, k4 = jax.random.split(key, 4)

    # Case 1: tiny shape, single tile (grid = (1, 1)), no tail masking.
    B, C = 8, 32
    logits = jax.random.normal(k1, (B, C), dtype=jnp.float32)
    target = jax.random.randint(k2, (B,), 0, C, dtype=jnp.int32)
    loss = jax.block_until_ready(ls_criterion(logits, target, eta))
    ref = jax.block_until_ready(_ls_criterion_ref(logits, target, eta))
    assert jnp.allclose(loss, ref, rtol=1e-5, atol=1e-5), (loss, ref)

    # Case 2: forced multi-tile grid with partial last tiles on both axes
    # (exercises online logsumexp, the masked last class tile, and the padded
    # last batch tile whose rows are dropped on writeback).
    B2, C2 = 12, 300
    logits2 = jax.random.normal(k3, (B2, C2), dtype=jnp.float32)
    target2 = jax.random.randint(k4, (B2,), 0, C2, dtype=jnp.int32)
    loss2 = jax.block_until_ready(
        ls_criterion(logits2, target2, eta, tile_b=8, tile_c=128))
    ref2 = jax.block_until_ready(_ls_criterion_ref(logits2, target2, eta))
    assert jnp.allclose(loss2, ref2, rtol=1e-4, atol=1e-5), (loss2, ref2)

    print("KERNEL_OK")
</pallas_src>

<mosaic_0001>
module attributes {stable_mosaic.version = 11 : i64} {
  func.func @_ls_loss_kernel(%arg0: i32, %arg1: i32, %arg2: memref<8x32xf32, #tpu.memory_space<vmem>>, %arg3: memref<8x1xf32, #tpu.memory_space<vmem>>, %arg4: memref<8x1xf32, #tpu.memory_space<vmem>>, %arg5: memref<8x1xf32, #tpu.memory_space<vmem>>, %arg6: memref<8x1xf32, #tpu.memory_space<vmem>>, %arg7: memref<8x1xf32, #tpu.memory_space<vmem>>) attributes {dimension_semantics = [#tpu.dimension_semantics<parallel>, #tpu.dimension_semantics<arbitrary>], iteration_bounds = array<i64: 1, 1>, scalar_prefetch = 0 : i64, scratch_operands = 3 : i64, tpu.core_type = #tpu.core_type<tc>, window_params = [{transform_indices = @transform_0, window_bounds = array<i64: 8, 32>}, {transform_indices = @transform_1, window_bounds = array<i64: 8, 1>}, {transform_indices = @transform_2, window_bounds = array<i64: 8, 1>}]} {
    %c0_i32 = arith.constant 0 : i32
    %0 = arith.cmpi eq, %arg1, %c0_i32 : i32
    %1 = arith.extui %0 : i1 to i32
    %c0_i32_0 = arith.constant 0 : i32
    %2 = arith.cmpi ne, %1, %c0_i32_0 : i32
    scf.if %2 {
      %cst_18 = arith.constant 0xFF800000 : f32
      %28 = vector.broadcast %cst_18 : f32 to vector<8x1xf32>
      %c0_19 = arith.constant 0 : index
      %c0_20 = arith.constant 0 : index
      %29 = vector.load %arg5[%c0_19, %c0_20] : memref<8x1xf32, #tpu.memory_space<vmem>>, vector<8x1xf32>
      tpu.vector_store %arg5[%c0_19, %c0_20], %28 {strides = array<i32>} : memref<8x1xf32, #tpu.memory_space<vmem>>, vector<8x1xf32>,
      %cst_21 = arith.constant 0.000000e+00 : f32
      %30 = vector.broadcast %cst_21 : f32 to vector<8x1xf32>
      %c0_22 = arith.constant 0 : index
      %c0_23 = arith.constant 0 : index
      %31 = vector.load %arg6[%c0_22, %c0_23] : memref<8x1xf32, #tpu.memory_space<vmem>>, vector<8x1xf32>
      tpu.vector_store %arg6[%c0_22, %c0_23], %30 {strides = array<i32>} : memref<8x1xf32, #tpu.memory_space<vmem>>, vector<8x1xf32>,
      %cst_24 = arith.constant 0.000000e+00 : f32
      %32 = vector.broadcast %cst_24 : f32 to vector<8x1xf32>
      %c0_25 = arith.constant 0 : index
      %c0_26 = arith.constant 0 : index
      %33 = vector.load %arg7[%c0_25, %c0_26] : memref<8x1xf32, #tpu.memory_space<vmem>>, vector<8x1xf32>
      tpu.vector_store %arg7[%c0_25, %c0_26], %32 {strides = array<i32>} : memref<8x1xf32, #tpu.memory_space<vmem>>, vector<8x1xf32>,
    } else {
    }
    %c0 = arith.constant 0 : index
    %c0_1 = arith.constant 0 : index
    %3 = vector.load %arg2[%c0, %c0_1] : memref<8x32xf32, #tpu.memory_space<vmem>>, vector<8x32xf32>
    %c0_2 = arith.constant 0 : index
    %c0_3 = arith.constant 0 : index
    %4 = vector.load %arg5[%c0_2, %c0_3] : memref<8x1xf32, #tpu.memory_space<vmem>>, vector<8x1xf32>
    %cst = arith.constant dense<0xFF800000> : vector<8xf32>
    %5 = vector.multi_reduction <maximumf>, %3, %cst [1] : vector<8x32xf32> to vector<8xf32>
    %6 = vector.shape_cast %5 : vector<8xf32> to vector<8x1xf32>
    %7 = arith.maximumf %4, %6 : vector<8x1xf32>
    %8 = arith.subf %4, %7 : vector<8x1xf32>
    %9 = math.exp %8 : vector<8x1xf32>
    %10 = vector.broadcast %7 : vector<8x1xf32> to vector<8x32xf32>
    %11 = arith.subf %3, %10 : vector<8x32xf32>
    %12 = math.exp %11 : vector<8x32xf32>
    %c0_4 = arith.constant 0 : index
    %c0_5 = arith.constant 0 : index
    %13 = vector.load %arg6[%c0_4, %c0_5] : memref<8x1xf32, #tpu.memory_space<vmem>>, vector<8x1xf32>
    %14 = arith.mulf %9, %13 : vector<8x1xf32>
    %cst_6 = arith.constant dense<0.000000e+00> : vector<8xf32>
    %15 = vector.multi_reduction <add>, %12, %cst_6 [1] : vector<8x32xf32> to vector<8xf32>
    %16 = vector.shape_cast %15 : vector<8xf32> to vector<8x1xf32>
    %17 = arith.addf %14, %16 : vector<8x1xf32>
    %c0_7 = arith.constant 0 : index
    %c0_8 = arith.constant 0 : index
    %18 = vector.load %arg6[%c0_7, %c0_8] : memref<8x1xf32, #tpu.memory_space<vmem>>, vector<8x1xf32>
    tpu.vector_store %arg6[%c0_7, %c0_8], %17 {strides = array<i32>} : memref<8x1xf32, #tpu.memory_space<vmem>>, vector<8x1xf32>,
    %c0_9 = arith.constant 0 : index
    %c0_10 = arith.constant 0 : index
    %19 = vector.load %arg5[%c0_9, %c0_10] : memref<8x1xf32, #tpu.memory_space<vmem>>, vector<8x1xf32>
    tpu.vector_store %arg5[%c0_9, %c0_10], %7 {strides = array<i32>} : memref<8x1xf32, #tpu.memory_space<vmem>>, vector<8x1xf32>,
    %c0_11 = arith.constant 0 : index
    %c0_12 = arith.constant 0 : index
    %20 = vector.load %arg7[%c0_11, %c0_12] : memref<8x1xf32, #tpu.memory_space<vmem>>, vector<8x1xf32>
    %cst_13 = arith.constant dense<0.000000e+00> : vector<8xf32>
    %21 = vector.multi_reduction <add>, %3, %cst_13 [1] : vector<8x32xf32> to vector<8xf32>
    %22 = vector.shape_cast %21 : vector<8xf32> to vector<8x1xf32>
    %23 = arith.addf %20, %22 : vector<8x1xf32>
    %c0_14 = arith.constant 0 : index
    %c0_15 = arith.constant 0 : index
    %24 = vector.load %arg7[%c0_14, %c0_15] : memref<8x1xf32, #tpu.memory_space<vmem>>, vector<8x1xf32>
    tpu.vector_store %arg7[%c0_14, %c0_15], %23 {strides = array<i32>} : memref<8x1xf32, #tpu.memory_space<vmem>>, vector<8x1xf32>,
    %c0_i32_16 = arith.constant 0 : i32
    %25 = arith.cmpi eq, %arg1, %c0_i32_16 : i32
    %26 = arith.extui %25 : i1 to i32
    %c0_i32_17 = arith.constant 0 : i32
    %27 = arith.cmpi ne, %26, %c0_i32_17 : i32
    scf.if %27 {
      %c0_18 = arith.constant 0 : index
      %c0_19 = arith.constant 0 : index
      %28 = vector.load %arg5[%c0_18, %c0_19] : memref<8x1xf32, #tpu.memory_space<vmem>>, vector<8x1xf32>
      %c0_20 = arith.constant 0 : index
      %c0_21 = arith.constant 0 : index
      %29 = vector.load %arg6[%c0_20, %c0_21] : memref<8x1xf32, #tpu.memory_space<vmem>>, vector<8x1xf32>
      %30 = math.log %29 : vector<8x1xf32>
      %31 = arith.addf %28, %30 : vector<8x1xf32>
      %c0_22 = arith.constant 0 : index
      %c0_23 = arith.constant 0 : index
      %32 = vector.load %arg7[%c0_22, %c0_23] : memref<8x1xf32, #tpu.memory_space<vmem>>, vector<8x1xf32>
      %cst_24 = arith.constant 3.200000e+01 : f32
      %33 = vector.broadcast %cst_24 : f32 to vector<8x1xf32>
      %34 = arith.mulf %33, %31 : vector<8x1xf32>
      %35 = arith.subf %32, %34 : vector<8x1xf32>
      %c0_25 = arith.constant 0 : index
      %c0_26 = arith.constant 0 : index
      %36 = vector.load %arg3[%c0_25, %c0_26] : memref<8x1xf32, #tpu.memory_space<vmem>>, vector<8x1xf32>
      %37 = arith.subf %36, %31 : vector<8x1xf32>
      %cst_27 = arith.constant 0.899999976 : f32
      %cst_28 = arith.constant 0.0032258064 : f32
      %38 = arith.subf %cst_27, %cst_28 : f32
      %cst_29 = arith.constant 0.0032258064 : f32
      %39 = vector.broadcast %cst_29 : f32 to vector<8x1xf32>
      %40 = arith.mulf %39, %35 : vector<8x1xf32>
      %41 = vector.broadcast %38 : f32 to vector<8x1xf32>
      %42 = arith.mulf %41, %37 : vector<8x1xf32>
      %43 = arith.addf %40, %42 : vector<8x1xf32>
      %cst_30 = arith.constant 0.000000e+00 : f32
      %44 = vector.broadcast %cst_30 : f32 to vector<8x1xf32>
      %45 = arith.subf %44, %43 : vector<8x1xf32>
      %c0_31 = arith.constant 0 : index
      %c0_32 = arith.constant 0 : index
      %46 = vector.load %arg4[%c0_31, %c0_32] : memref<8x1xf32, #tpu.memory_space<vmem>>, vector<8x1xf32>
      tpu.vector_store %arg4[%c0_31, %c0_32], %45 {strides = array<i32>} : memref<8x1xf32, #tpu.memory_space<vmem>>, vector<8x1xf32>,
    } else {
    }
    return
  }
  func.func @transform_0(%arg0: i32, %arg1: i32) -> (i32, i32) {
    %c0_i32 = arith.constant 0 : i32
    return %arg0, %arg1 : i32, i32
  }
  func.func @transform_1(%arg0: i32, %arg1: i32) -> (i32, i32) {
    %c0_i32 = arith.constant 0 : i32
    %c0_i32_0 = arith.constant 0 : i32
    return %arg0, %c0_i32 : i32, i32
  }
  func.func @transform_2(%arg0: i32, %arg1: i32) -> (i32, i32) {
    %c0_i32 = arith.constant 0 : i32
    %c0_i32_0 = arith.constant 0 : i32
    return %arg0, %c0_i32 : i32, i32
  }
}

</mosaic_0001>

<llo_original>
// kernel: tpu_custom_call.1
$region0: #{tpu_custom_call.1}
  #allocation0 [shape = 'u32[]', space=smem, size = 0x4, offset = 0x4, fixed_abs, tag = 'smem constant byte address 0x4 - core index']
  #allocation1 [shape = 'u32[72,128]{1,0:T(1,128)}', space=vmem, size = 0x9000, scoped, tag = 'internal scratch']
  #allocation2 [shape = 'f32[8,1]{1,0:T(8,128)}', space=vmem, size = 0x1000, scoped, tag = 'scratch operand']
  #allocation3 [shape = 'f32[8,1]{1,0:T(8,128)}', space=vmem, size = 0x1000, scoped, tag = 'scratch operand']
  #allocation4 [shape = 'f32[8,1]{1,0:T(8,128)}', space=vmem, size = 0x1000, scoped, tag = 'scratch operand']
  %s0 = inlined_call_operand.vmem [shape: f32[8,32], index: 0, kind: input, shape index: {}]
  %s1 = inlined_call_operand.vmem [shape: f32[8,1], index: 1, kind: input, shape index: {}]
  %s2 = inlined_call_operand.vmem [shape: f32[8,1], index: 2, kind: output, shape index: {}]
  %s3 = sld [smem:[#allocation0]]
  $region26: #{tpu_custom_call.1} parent=0
    _
  %s5 = ssub.s32 1, %s3
  %s6 = scalar_select 0, %s5, %s3
  // Predicated region
  $region2: #{tpu_custom_call.1} parent=0 // pred_check
    _
  $region3: #{tpu_custom_call.1} parent=0 // pred_check_branch
    %8 = sbr.rel (0) target = $region5
  $region4: #{tpu_custom_call.1} parent=0 // pred_region
    _
  $region5: #{tpu_custom_call.1} parent=0 // pred_fallthru
    _
  // Predicated region
  $region6: #{tpu_custom_call.1} parent=0 // pred_check
    _
  $region7: #{tpu_custom_call.1} parent=0 // pred_check_branch
    %10 = sbr.rel (0) target = $region9
  $region8: #{tpu_custom_call.1} parent=0 // pred_region
    _
  $region9: #{tpu_custom_call.1} parent=0 // pred_fallthru
    _
  %p11 = scmp.eq.s32.totalorder 0, 0
  // Predicated region
  $region10: #{tpu_custom_call.1} parent=0 // pred_check
    %p12 = pneg %p11
  $region11: #{tpu_custom_call.1} parent=0 // pred_check_branch
    %14 = sbr.rel (%p12) target = $region13
  $region12: #{tpu_custom_call.1} parent=0 // pred_region
    %vm15 = vcmask 7168
    %16 = vst.msk [vmem:[#allocation2] sm:$0xff] %vm15, -inf
    %17 = vst.msk [vmem:[#allocation3] sm:$0xff] %vm15, 0.0
    %18 = vst.msk [vmem:[#allocation4] sm:$0xff] %vm15, 0.0
  $region13: #{tpu_custom_call.1} parent=0 // pred_fallthru
    _
  %v19 = vld [vmem:[%s0] sm:$0xff]
  %v20 = vld [vmem:[#allocation2] sm:$0xff]
  %vm21 = vcmask 261120
  %v22 = vsel %vm21, %v19, -inf
  %23 = vmax.xlane.f32.xlu0 %v22
  %v24 = vpop.xlane.xlu0 %23
  %v25 = vmax.f32 %v20, %v24
  %v26 = vsub.f32 %v20, %v25
  %v27 = vmul.f32 %v26, 1.442695
  %v28 = vpow.pop %v27
  %30 = vset.pattern.permute.xlu0 0
  %31 = vperm.xlu0 %30, %v25
  %v32 = vpop.permute.xlu0 %31
  %v34 = vsub.f32 %v19, %v32
  %v35 = vmul.f32 %v34, 1.442695
  %v36 = vpow.pop %v35
  %v37 = vld [vmem:[#allocation3] sm:$0xff]
  %v38 = vmul.f32 %v28, %v37
  %v39 = vsel %vm21, %v36, 0.0
  %40 = vadd.xlane.f32.xlu0 %v39
  %v41 = vpop.xlane.xlu0 %40
  %v42 = vadd.f32 %v38, %v41
  %vm43 = vcmask 7168
  %44 = vst.msk [vmem:[#allocation3] sm:$0xff] %vm43, %v42
  %45 = vst.msk [vmem:[#allocation2] sm:$0xff] %vm43, %v25
  %v46 = vld [vmem:[#allocation4] sm:$0xff]
  %v47 = vsel %vm21, %v19, 0.0
  %48 = vadd.xlane.f32.xlu0 %v47
  %v49 = vpop.xlane.xlu0 %48
  %v50 = vadd.f32 %v46, %v49
  %51 = vst.msk [vmem:[#allocation4] sm:$0xff] %vm43, %v50
  // Predicated region
  $region14: #{tpu_custom_call.1} parent=0 // pred_check
    %p52 = pneg %p11
  $region15: #{tpu_custom_call.1} parent=0 // pred_check_branch
    %54 = sbr.rel (%p52) target = $region17
  $region16: #{tpu_custom_call.1} parent=0 // pred_region
    %v55 = vld [vmem:[#allocation2] sm:$0xff]
    %v56 = vld [vmem:[#allocation3] sm:$0xff]
    %v57 = vlog2.pop %v56
    %v58 = vmul.f32 %v57, 0.6931472
    %v59 = vadd.f32 %v55, %v58
    %v60 = vld [vmem:[#allocation4] sm:$0xff]
    %v61 = vmul.f32 %v59, 32.0
    %v62 = vsub.f32 %v60, %v61
    %v63 = vld [vmem:[%s1] sm:$0xff]
    %v64 = vsub.f32 %v63, %v59
    %v65 = vmul.f32 %v62, 0.0032258064
    %v66 = vmul.f32 %v64, 0.8967742
    %v67 = vadd.f32 %v65, %v66
    %v68 = vsub.f32 0.0, %v67
    %69 = vst.msk [vmem:[%s2] sm:$0xff] %vm43, %v68
  $region17: #{tpu_custom_call.1} parent=0 // pred_fallthru
    _
  // Predicated region
  $region18: #{tpu_custom_call.1} parent=0 // pred_check
    _
  $region19: #{tpu_custom_call.1} parent=0 // pred_check_branch
    %71 = sbr.rel (0) target = $region21
  $region20: #{tpu_custom_call.1} parent=0 // pred_region
    _
  $region21: #{tpu_custom_call.1} parent=0 // pred_fallthru
    _
  // Predicated region
  $region22: #{tpu_custom_call.1} parent=0 // pred_check
    _
  $region23: #{tpu_custom_call.1} parent=0 // pred_check_branch
    %73 = sbr.rel (0) target = $region25
  $region24: #{tpu_custom_call.1} parent=0 // pred_region
    _
  $region25: #{tpu_custom_call.1} parent=0 // pred_fallthru
    _

</llo_original>
